<compile_context>
chip_gen: v7x
topology: tpu7x:2x2x1
jax: 0.10.0
libtpu: 0.0.40
codegen_flags: <defaults>
</compile_context>

<pallas_src>
import jax
import jax.numpy as jnp
from jax.experimental import pallas as pl
from jax.experimental.pallas import tpu as pltpu


def _encoder_residual_block_kernel(
    x_ref,       # (C, Win)   halo-padded, batch-merged input slab for one group
    w1s_ref,     # (C, 5C)    conv1 taps with conv2 + BN folded in, k-major cols
    w3s_ref,     # (C, 3C)    conv3 taps, k-major cols
    bias_ref,    # (C, 2)     [:,0] = folded conv1/conv2/BN bias, [:,1] = conv3 bias
    fc1_ref,     # (Cr, C)    SE fc1 (bias-free)
    fc2_ref,     # (C, Cr)    SE fc2 (bias-free)
    hmask_ref,   # (1, Wg+2)  1.0 on valid (in-batch) h columns, else 0.0
    poolP_ref,   # (Wg, Bt)   per-batch mean-pool matrix (1/L on valid cols)
    gateE_ref,   # (Bt, Wg)   per-batch gate broadcast matrix (0/1)
    o_ref,       # (C, Wg)    output slab, column p = b_local*Lp + j
):
    Wg = o_ref.shape[-1]
    W1 = Wg + 2
    xg = x_ref[...]

    # Conv1d(k=5, pad=2) + Conv1d(k=1) + BatchNorm (folded) as ONE im2col matmul.
    stk1 = jnp.concatenate([xg[:, k:k + W1] for k in range(5)], axis=0)     # (5C, W1)
    h = jnp.dot(w1s_ref[...], stk1, preferred_element_type=jnp.float32)
    h = h + bias_ref[:, 0:1]

    # Swish, then zero per-batch halo columns so conv3 sees exact zero padding.
    h = h * jax.nn.sigmoid(h)
    h = h * hmask_ref[...]

    # Conv1d(k=3, pad=1) as one im2col matmul.
    stk3 = jnp.concatenate([h[:, k:k + Wg] for k in range(3)], axis=0)      # (3C, Wg)
    g = jnp.dot(w3s_ref[...], stk3, preferred_element_type=jnp.float32)
    g = g + bias_ref[:, 1:2]

    # SELayer: per-batch global average pool over L, 2-layer MLP, sigmoid gate.
    pooled = jnp.dot(g, poolP_ref[...], preferred_element_type=jnp.float32)     # (C, Bt)
    y = jnp.maximum(jnp.dot(fc1_ref[...], pooled,
                            preferred_element_type=jnp.float32), 0.0)           # (Cr, Bt)
    y = jax.nn.sigmoid(jnp.dot(fc2_ref[...], y,
                               preferred_element_type=jnp.float32))             # (C, Bt)
    gate = jnp.dot(y, gateE_ref[...], preferred_element_type=jnp.float32)       # (C, Wg)

    # Residual: out = x + 0.1 * seq(x).
    o_ref[...] = (xg[:, 3:3 + Wg] + 0.1 * (g * gate)).astype(o_ref.dtype)


def _pick_group_batch(B, Lp, target_lanes):
    """Largest divisor Bt of B whose merged width Bt*Lp fits the lane budget."""
    best = 1
    for bt in range(1, B + 1):
        if B % bt == 0 and bt * Lp <= target_lanes:
            best = bt
    return best


def encoder_residual_block(x, params, *, eps=1e-5, target_lanes=2048):
    """x: (B, C, L) float32. params: dict of PyTorch-layout weights."""
    B, C, L = x.shape
    Lp = L + 6                       # per-batch segment: 3 zero halo columns each side
    Bt = _pick_group_batch(B, Lp, target_lanes)
    G = B // Bt                      # grid steps (batch groups)
    Wg = Bt * Lp                     # output slab width per group
    W1 = Wg + 2                      # width of conv1 output (conv3 input) slab
    Win = Wg + 6                     # input slab width per group
    Cr = params["fc1_w"].shape[0]
    hp = jax.lax.Precision.HIGHEST

    # ---- weight prep (tiny, one-time): fold conv2 (k=1) + BN into conv1 ----
    scale = params["bn_gamma"] / jnp.sqrt(params["bn_var"] + eps)               # (C,)
    shift = params["bn_beta"] - params["bn_mean"] * scale
    w2 = params["conv2_w"][:, :, 0]                                             # (C, C)
    sw2 = scale[:, None] * w2                                                   # diag(scale) @ W2
    w1p = jnp.einsum("oc,cik->oik", sw2, params["conv1_w"], precision=hp)       # (C, C, 5)
    w1s = jnp.transpose(w1p, (0, 2, 1)).reshape(C, 5 * C).astype(jnp.float32)   # k-major cols
    bias1 = (jnp.dot(sw2, params["conv1_b"], precision=hp)
             + scale * params["conv2_b"] + shift)                               # (C,)
    w3s = jnp.transpose(params["conv3_w"], (0, 2, 1)).reshape(C, 3 * C).astype(jnp.float32)
    biasp = jnp.stack([bias1, params["conv3_b"]], axis=1).astype(jnp.float32)   # (C, 2)
    fc1 = params["fc1_w"].astype(jnp.float32)
    fc2 = params["fc2_w"].astype(jnp.float32)

    # ---- hoisted masks / pooling matrices (identical for every group) ----
    m1 = jnp.arange(W1)
    off1 = m1 % Lp
    hmask = ((off1 >= 1) & (off1 <= L) & (m1 < Wg)).astype(jnp.float32)[None, :]  # (1, W1)
    p_idx = jnp.arange(Wg)
    onehot = ((p_idx % Lp < L)[:, None]
              & ((p_idx // Lp)[:, None] == jnp.arange(Bt)[None, :]))
    poolP = onehot.astype(jnp.float32) / L                                       # (Wg, Bt)
    gateE = onehot.astype(jnp.float32).T                                         # (Bt, Wg)

    # ---- layout plumbing: (B,C,L) -> (G, C, Bt*Lp + 6), zero halos ----
    xp = jnp.pad(x.astype(jnp.float32), ((0, 0), (0, 0), (3, 3)))                # (B, C, Lp)
    xg = xp.reshape(G, Bt, C, Lp).transpose(0, 2, 1, 3).reshape(G, C, Wg)
    xg = jnp.pad(xg, ((0, 0), (0, 0), (0, 6)))                                   # (G, C, Win)

    def full(shape):
        return pl.BlockSpec(shape, lambda g, n=len(shape): (0,) * n)

    # TODO(synk): for very large L where even Bt=1 exceeds the VMEM budget,
    # additionally tile L with a +/-2 halo (manual make_async_copy) per step.
    out = pl.pallas_call(
        _encoder_residual_block_kernel,
        out_shape=jax.ShapeDtypeStruct((G, C, Wg), x.dtype),
        grid_spec=pltpu.PrefetchScalarGridSpec(
            num_scalar_prefetch=0,
            grid=(G,),
            in_specs=[
                pl.BlockSpec((None, C, Win), lambda g: (g, 0, 0)),   # x group slab
                full((C, 5 * C)), full((C, 3 * C)), full((C, 2)),
                full((Cr, C)), full((C, Cr)),
                full((1, W1)), full((Wg, Bt)), full((Bt, Wg)),
            ],
            out_specs=pl.BlockSpec((None, C, Wg), lambda g: (g, 0, 0)),
        ),
        compiler_params=pltpu.CompilerParams(
            dimension_semantics=("parallel",),   # groups shard across TCs (v7x)
        ),
    )(xg, w1s, w3s, biasp, fc1, fc2, hmask, poolP, gateE)

    # ---- layout plumbing back: (G, C, Bt*Lp) -> (B, C, L) ----
    out = out.reshape(G, C, Bt, Lp)[:, :, :, :L]
    out = out.transpose(0, 2, 1, 3).reshape(B, C, L)
    return out


def _ref_forward(x, params, *, eps=1e-5):
    """Pure-JAX reference (eval-mode BatchNorm), mirrors the PyTorch module."""
    hp = jax.lax.Precision.HIGHEST

    def conv1d(h, w, b, pad):
        out = jax.lax.conv_general_dilated(
            h, w, window_strides=(1,), padding=[(pad, pad)],
            dimension_numbers=("NCH", "OIH", "NCH"), precision=hp)
        return out + b[None, :, None]

    h = conv1d(x, params["conv1_w"], params["conv1_b"], 2)
    h = conv1d(h, params["conv2_w"], params["conv2_b"], 0)
    scale = params["bn_gamma"] / jnp.sqrt(params["bn_var"] + eps)
    shift = params["bn_beta"] - params["bn_mean"] * scale
    h = h * scale[None, :, None] + shift[None, :, None]
    h = h * jax.nn.sigmoid(h)                                      # Swish
    g = conv1d(h, params["conv3_w"], params["conv3_b"], 1)
    pooled = jnp.mean(g, axis=2)                                   # (B, C)
    y = jnp.maximum(jnp.dot(pooled, params["fc1_w"].T, precision=hp), 0.0)
    y = jax.nn.sigmoid(jnp.dot(y, params["fc2_w"].T, precision=hp))
    return x + 0.1 * (g * y[:, :, None])


if __name__ == "__main__":
    B, C, L = 2, 32, 16          # dim=32 so SE reduction 16 -> hidden 2
    Cr = C // 16

    key = jax.random.PRNGKey(0)
    ks = jax.random.split(key, 12)

    def uni(k, shape, bound):
        return jax.random.uniform(k, shape, jnp.float32, -bound, bound)

    params = {
        "conv1_w": uni(ks[0], (C, C, 5), (C * 5) ** -0.5),
        "conv1_b": uni(ks[1], (C,), (C * 5) ** -0.5),
        "conv2_w": uni(ks[2], (C, C, 1), (C * 1) ** -0.5),
        "conv2_b": uni(ks[3], (C,), (C * 1) ** -0.5),
        "bn_gamma": jax.random.uniform(ks[4], (C,), jnp.float32, 0.5, 1.5),
        "bn_beta": 0.1 * jax.random.normal(ks[5], (C,), jnp.float32),
        "bn_mean": 0.1 * jax.random.normal(ks[6], (C,), jnp.float32),
        "bn_var": jax.random.uniform(ks[7], (C,), jnp.float32, 0.5, 1.5),
        "conv3_w": uni(ks[8], (C, C, 3), (C * 3) ** -0.5),
        "conv3_b": uni(ks[9], (C,), (C * 3) ** -0.5),
        "fc1_w": uni(ks[10], (Cr, C), C ** -0.5),
        "fc2_w": uni(ks[11], (C, Cr), Cr ** -0.5),
    }

    x = jax.random.normal(jax.random.PRNGKey(1), (B, C, L), dtype=jnp.float32)

    fwd = jax.jit(encoder_residual_block)
    y = fwd(x, params)
    jax.block_until_ready(y)

    y_ref = _ref_forward(x, params)
    assert y.shape == x.shape and y.dtype == x.dtype
    assert jnp.allclose(y, y_ref, atol=5e-3, rtol=5e-3), float(
        jnp.max(jnp.abs(y - y_ref)))

    print("KERNEL_OK")
</pallas_src>

<mosaic_0001>
module attributes {stable_mosaic.version = 11 : i64} {
  func.func @_encoder_residual_block_kernel(%arg0: i32, %arg1: memref<1x32x50xf32, #tpu.memory_space<vmem>>, %arg2: memref<32x160xf32, #tpu.memory_space<vmem>>, %arg3: memref<32x96xf32, #tpu.memory_space<vmem>>, %arg4: memref<32x2xf32, #tpu.memory_space<vmem>>, %arg5: memref<2x32xf32, #tpu.memory_space<vmem>>, %arg6: memref<32x2xf32, #tpu.memory_space<vmem>>, %arg7: memref<1x46xf32, #tpu.memory_space<vmem>>, %arg8: memref<44x2xf32, #tpu.memory_space<vmem>>, %arg9: memref<2x44xf32, #tpu.memory_space<vmem>>, %arg10: memref<1x32x44xf32, #tpu.memory_space<vmem>>) attributes {dimension_semantics = [#tpu.dimension_semantics<parallel>], iteration_bounds = array<i64: 1>, scalar_prefetch = 0 : i64, scratch_operands = 0 : i64, tpu.core_type = #tpu.core_type<tc>, window_params = [{transform_indices = @transform_0, window_bounds = array<i64: 1, 32, 50>}, {pipeline_mode = #tpu.pipeline_mode<synchronous>, transform_indices = @transform_1, window_bounds = array<i64: 32, 160>}, {pipeline_mode = #tpu.pipeline_mode<synchronous>, transform_indices = @transform_2, window_bounds = array<i64: 32, 96>}, {pipeline_mode = #tpu.pipeline_mode<synchronous>, transform_indices = @transform_3, window_bounds = array<i64: 32, 2>}, {pipeline_mode = #tpu.pipeline_mode<synchronous>, transform_indices = @transform_4, window_bounds = array<i64: 2, 32>}, {pipeline_mode = #tpu.pipeline_mode<synchronous>, transform_indices = @transform_5, window_bounds = array<i64: 32, 2>}, {pipeline_mode = #tpu.pipeline_mode<synchronous>, transform_indices = @transform_6, window_bounds = array<i64: 1, 46>}, {pipeline_mode = #tpu.pipeline_mode<synchronous>, transform_indices = @transform_7, window_bounds = array<i64: 44, 2>}, {pipeline_mode = #tpu.pipeline_mode<synchronous>, transform_indices = @transform_8, window_bounds = array<i64: 2, 44>}, {transform_indices = @transform_9, window_bounds = array<i64: 1, 32, 44>}]} {
    %c0 = arith.constant 0 : index
    %c0_0 = arith.constant 0 : index
    %c0_1 = arith.constant 0 : index
    %0 = vector.load %arg1[%c0, %c0_0, %c0_1] : memref<1x32x50xf32, #tpu.memory_space<vmem>>, vector<1x32x50xf32>
    %1 = vector.shape_cast %0 : vector<1x32x50xf32> to vector<32x50xf32>
    %2 = vector.extract_strided_slice %1 {offsets = [0, 0], sizes = [32, 46], strides = [1, 1]} : vector<32x50xf32> to vector<32x46xf32>
    %3 = vector.extract_strided_slice %1 {offsets = [0, 1], sizes = [32, 46], strides = [1, 1]} : vector<32x50xf32> to vector<32x46xf32>
    %4 = vector.extract_strided_slice %1 {offsets = [0, 2], sizes = [32, 46], strides = [1, 1]} : vector<32x50xf32> to vector<32x46xf32>
    %5 = vector.extract_strided_slice %1 {offsets = [0, 3], sizes = [32, 46], strides = [1, 1]} : vector<32x50xf32> to vector<32x46xf32>
    %6 = vector.extract_strided_slice %1 {offsets = [0, 4], sizes = [32, 46], strides = [1, 1]} : vector<32x50xf32> to vector<32x46xf32>
    %7 = tpu.concatenate %2, %3, %4, %5, %6 in 0 : vector<32x46xf32>, vector<32x46xf32>, vector<32x46xf32>, vector<32x46xf32>, vector<32x46xf32> -> vector<160x46xf32>
    %c0_2 = arith.constant 0 : index
    %c0_3 = arith.constant 0 : index
    %8 = vector.load %arg2[%c0_2, %c0_3] : memref<32x160xf32, #tpu.memory_space<vmem>>, vector<32x160xf32>
    %cst = arith.constant dense<0.000000e+00> : vector<32x46xf32>
    %9 = tpu.matmul %8, %7, %cst {dimension_numbers = #tpu.dot_dimension_numbers<[1], [0], [0], [1], [0, 0, 1, 1], [], []>} : vector<32x160xf32>, vector<160x46xf32>, vector<32x46xf32> -> vector<32x46xf32>
    %c0_4 = arith.constant 0 : index
    %c0_5 = arith.constant 0 : index
    %10 = vector.load %arg4[%c0_4, %c0_5] : memref<32x2xf32, #tpu.memory_space<vmem>>, vector<32x1xf32>
    %11 = vector.broadcast %10 : vector<32x1xf32> to vector<32x46xf32>
    %12 = arith.addf %9, %11 : vector<32x46xf32>
    %13 = arith.negf %12 : vector<32x46xf32>
    %14 = math.exp %13 : vector<32x46xf32>
    %cst_6 = arith.constant 1.000000e+00 : f32
    %15 = vector.broadcast %cst_6 : f32 to vector<32x46xf32>
    %16 = arith.addf %15, %14 : vector<32x46xf32>
    %17 = arith.divf %15, %16 : vector<32x46xf32>
    %18 = arith.mulf %12, %17 : vector<32x46xf32>
    %c0_7 = arith.constant 0 : index
    %c0_8 = arith.constant 0 : index
    %19 = vector.load %arg7[%c0_7, %c0_8] : memref<1x46xf32, #tpu.memory_space<vmem>>, vector<1x46xf32>
    %20 = vector.broadcast %19 : vector<1x46xf32> to vector<32x46xf32>
    %21 = arith.mulf %18, %20 : vector<32x46xf32>
    %22 = vector.extract_strided_slice %21 {offsets = [0, 0], sizes = [32, 44], strides = [1, 1]} : vector<32x46xf32> to vector<32x44xf32>
    %23 = vector.extract_strided_slice %21 {offsets = [0, 1], sizes = [32, 44], strides = [1, 1]} : vector<32x46xf32> to vector<32x44xf32>
    %24 = vector.extract_strided_slice %21 {offsets = [0, 2], sizes = [32, 44], strides = [1, 1]} : vector<32x46xf32> to vector<32x44xf32>
    %25 = tpu.concatenate %22, %23, %24 in 0 : vector<32x44xf32>, vector<32x44xf32>, vector<32x44xf32> -> vector<96x44xf32>
    %c0_9 = arith.constant 0 : index
    %c0_10 = arith.constant 0 : index
    %26 = vector.load %arg3[%c0_9, %c0_10] : memref<32x96xf32, #tpu.memory_space<vmem>>, vector<32x96xf32>
    %cst_11 = arith.constant dense<0.000000e+00> : vector<32x44xf32>
    %27 = tpu.matmul %26, %25, %cst_11 {dimension_numbers = #tpu.dot_dimension_numbers<[1], [0], [0], [1], [0, 0, 1, 1], [], []>} : vector<32x96xf32>, vector<96x44xf32>, vector<32x44xf32> -> vector<32x44xf32>
    %c0_12 = arith.constant 0 : index
    %c1 = arith.constant 1 : index
    %28 = vector.load %arg4[%c0_12, %c1] : memref<32x2xf32, #tpu.memory_space<vmem>>, vector<32x1xf32>
    %29 = vector.broadcast %28 : vector<32x1xf32> to vector<32x44xf32>
    %30 = arith.addf %27, %29 : vector<32x44xf32>
    %c0_13 = arith.constant 0 : index
    %c0_14 = arith.constant 0 : index
    %31 = vector.load %arg8[%c0_13, %c0_14] : memref<44x2xf32, #tpu.memory_space<vmem>>, vector<44x2xf32>
    %cst_15 = arith.constant dense<0.000000e+00> : vector<32x2xf32>
    %32 = tpu.matmul %30, %31, %cst_15 {dimension_numbers = #tpu.dot_dimension_numbers<[1], [0], [0], [1], [0, 0, 1, 1], [], []>} : vector<32x44xf32>, vector<44x2xf32>, vector<32x2xf32> -> vector<32x2xf32>
    %c0_16 = arith.constant 0 : index
    %c0_17 = arith.constant 0 : index
    %33 = vector.load %arg5[%c0_16, %c0_17] : memref<2x32xf32, #tpu.memory_space<vmem>>, vector<2x32xf32>
    %cst_18 = arith.constant dense<0.000000e+00> : vector<2x2xf32>
    %34 = tpu.matmul %33, %32, %cst_18 {dimension_numbers = #tpu.dot_dimension_numbers<[1], [0], [0], [1], [0, 0, 1, 1], [], []>} : vector<2x32xf32>, vector<32x2xf32>, vector<2x2xf32> -> vector<2x2xf32>
    %cst_19 = arith.constant 0.000000e+00 : f32
    %35 = vector.broadcast %cst_19 : f32 to vector<2x2xf32>
    %36 = arith.maximumf %34, %35 : vector<2x2xf32>
    %c0_20 = arith.constant 0 : index
    %c0_21 = arith.constant 0 : index
    %37 = vector.load %arg6[%c0_20, %c0_21] : memref<32x2xf32, #tpu.memory_space<vmem>>, vector<32x2xf32>
    %cst_22 = arith.constant dense<0.000000e+00> : vector<32x2xf32>
    %38 = tpu.matmul %37, %36, %cst_22 {dimension_numbers = #tpu.dot_dimension_numbers<[1], [0], [0], [1], [0, 0, 1, 1], [], []>} : vector<32x2xf32>, vector<2x2xf32>, vector<32x2xf32> -> vector<32x2xf32>
    %39 = arith.negf %38 : vector<32x2xf32>
    %40 = math.exp %39 : vector<32x2xf32>
    %cst_23 = arith.constant 1.000000e+00 : f32
    %41 = vector.broadcast %cst_23 : f32 to vector<32x2xf32>
    %42 = arith.addf %41, %40 : vector<32x2xf32>
    %43 = arith.divf %41, %42 : vector<32x2xf32>
    %c0_24 = arith.constant 0 : index
    %c0_25 = arith.constant 0 : index
    %44 = vector.load %arg9[%c0_24, %c0_25] : memref<2x44xf32, #tpu.memory_space<vmem>>, vector<2x44xf32>
    %cst_26 = arith.constant dense<0.000000e+00> : vector<32x44xf32>
    %45 = tpu.matmul %43, %44, %cst_26 {dimension_numbers = #tpu.dot_dimension_numbers<[1], [0], [0], [1], [0, 0, 1, 1], [], []>} : vector<32x2xf32>, vector<2x44xf32>, vector<32x44xf32> -> vector<32x44xf32>
    %46 = vector.extract_strided_slice %1 {offsets = [0, 3], sizes = [32, 44], strides = [1, 1]} : vector<32x50xf32> to vector<32x44xf32>
    %47 = arith.mulf %30, %45 : vector<32x44xf32>
    %cst_27 = arith.constant 1.000000e-01 : f32
    %48 = vector.broadcast %cst_27 : f32 to vector<32x44xf32>
    %49 = arith.mulf %48, %47 : vector<32x44xf32>
    %50 = arith.addf %46, %49 : vector<32x44xf32>
    %c0_28 = arith.constant 0 : index
    %c0_29 = arith.constant 0 : index
    %c0_30 = arith.constant 0 : index
    %51 = vector.load %arg10[%c0_28, %c0_29, %c0_30] : memref<1x32x44xf32, #tpu.memory_space<vmem>>, vector<1x32x44xf32>
    %52 = vector.shape_cast %51 : vector<1x32x44xf32> to vector<32x44xf32>
    %53 = vector.shape_cast %50 : vector<32x44xf32> to vector<1x32x44xf32>
    tpu.vector_store %arg10[%c0_28, %c0_29, %c0_30], %53 {strides = array<i32>} : memref<1x32x44xf32, #tpu.memory_space<vmem>>, vector<1x32x44xf32>,
    return
  }
  func.func @transform_0(%arg0: i32) -> (i32, i32, i32) {
    %c0_i32 = arith.constant 0 : i32
    %c0_i32_0 = arith.constant 0 : i32
    %c0_i32_1 = arith.constant 0 : i32
    return %arg0, %c0_i32, %c0_i32_0 : i32, i32, i32
  }
  func.func @transform_1(%arg0: i32) -> (i32, i32) {
    %c0_i32 = arith.constant 0 : i32
    %c0_i32_0 = arith.constant 0 : i32
    %c0_i32_1 = arith.constant 0 : i32
    return %c0_i32, %c0_i32_0 : i32, i32
  }
  func.func @transform_2(%arg0: i32) -> (i32, i32) {
    %c0_i32 = arith.constant 0 : i32
    %c0_i32_0 = arith.constant 0 : i32
    %c0_i32_1 = arith.constant 0 : i32
    return %c0_i32, %c0_i32_0 : i32, i32
  }
  func.func @transform_3(%arg0: i32) -> (i32, i32) {
    %c0_i32 = arith.constant 0 : i32
    %c0_i32_0 = arith.constant 0 : i32
    %c0_i32_1 = arith.constant 0 : i32
    return %c0_i32, %c0_i32_0 : i32, i32
  }
  func.func @transform_4(%arg0: i32) -> (i32, i32) {
    %c0_i32 = arith.constant 0 : i32
    %c0_i32_0 = arith.constant 0 : i32
    %c0_i32_1 = arith.constant 0 : i32
    return %c0_i32, %c0_i32_0 : i32, i32
  }
  func.func @transform_5(%arg0: i32) -> (i32, i32) {
    %c0_i32 = arith.constant 0 : i32
    %c0_i32_0 = arith.constant 0 : i32
    %c0_i32_1 = arith.constant 0 : i32
    return %c0_i32, %c0_i32_0 : i32, i32
  }
  func.func @transform_6(%arg0: i32) -> (i32, i32) {
    %c0_i32 = arith.constant 0 : i32
    %c0_i32_0 = arith.constant 0 : i32
    %c0_i32_1 = arith.constant 0 : i32
    return %c0_i32, %c0_i32_0 : i32, i32
  }
  func.func @transform_7(%arg0: i32) -> (i32, i32) {
    %c0_i32 = arith.constant 0 : i32
    %c0_i32_0 = arith.constant 0 : i32
    %c0_i32_1 = arith.constant 0 : i32
    return %c0_i32, %c0_i32_0 : i32, i32
  }
  func.func @transform_8(%arg0: i32) -> (i32, i32) {
    %c0_i32 = arith.constant 0 : i32
    %c0_i32_0 = arith.constant 0 : i32
    %c0_i32_1 = arith.constant 0 : i32
    return %c0_i32, %c0_i32_0 : i32, i32
  }
  func.func @transform_9(%arg0: i32) -> (i32, i32, i32) {
    %c0_i32 = arith.constant 0 : i32
    %c0_i32_0 = arith.constant 0 : i32
    %c0_i32_1 = arith.constant 0 : i32
    return %arg0, %c0_i32, %c0_i32_0 : i32, i32, i32
  }
}

</mosaic_0001>

<llo_original>
// kernel: encoder_residual_block.1
$region0: #{encoder_residual_block.1}
  #allocation0 [shape = 'u32[]', space=smem, size = 0x4, offset = 0x4, fixed_abs, tag = 'smem constant byte address 0x4 - core index']
  #allocation1 [shape = 'u32[144,128]{1,0:T(1,128)}', space=vmem, size = 0x12000, scoped, tag = 'internal scratch']
  %s0 = inlined_call_operand.vmem [shape: f32[1,32,50], index: 0, kind: input, shape index: {}]
  %s1 = inlined_call_operand.vmem [shape: f32[32,160], index: 1, kind: input, shape index: {}]
  %s2 = inlined_call_operand.vmem [shape: f32[32,96], index: 2, kind: input, shape index: {}]
  %s3 = inlined_call_operand.vmem [shape: f32[32,2], index: 3, kind: input, shape index: {}]
  %s4 = inlined_call_operand.vmem [shape: f32[2,32], index: 4, kind: input, shape index: {}]
  %s5 = inlined_call_operand.vmem [shape: f32[32,2], index: 5, kind: input, shape index: {}]
  %s6 = inlined_call_operand.vmem [shape: f32[1,46], index: 6, kind: input, shape index: {}]
  %s7 = inlined_call_operand.vmem [shape: f32[44,2], index: 7, kind: input, shape index: {}]
  %s8 = inlined_call_operand.vmem [shape: f32[2,44], index: 8, kind: input, shape index: {}]
  %s9 = inlined_call_operand.vmem [shape: f32[1,32,44], index: 9, kind: output, shape index: {}]
  %s10 = sld [smem:[#allocation0]]
  $region46: #{encoder_residual_block.1} parent=0
    _
  %s12 = ssub.s32 1, %s10
  %s13 = scalar_select 0, %s12, %s10
  // Predicated region
  $region2: #{encoder_residual_block.1} parent=0 // pred_check
    _
  $region3: #{encoder_residual_block.1} parent=0 // pred_check_branch
    %15 = sbr.rel (0) target = $region5
  $region4: #{encoder_residual_block.1} parent=0 // pred_region
    _
  $region5: #{encoder_residual_block.1} parent=0 // pred_fallthru
    _
  // Predicated region
  $region6: #{encoder_residual_block.1} parent=0 // pred_check
    _
  $region7: #{encoder_residual_block.1} parent=0 // pred_check_branch
    %17 = sbr.rel (0) target = $region9
  $region8: #{encoder_residual_block.1} parent=0 // pred_region
    _
  $region9: #{encoder_residual_block.1} parent=0 // pred_fallthru
    _
  // Predicated region
  $region10: #{encoder_residual_block.1} parent=0 // pred_check
    _
  $region11: #{encoder_residual_block.1} parent=0 // pred_check_branch
    %19 = sbr.rel (0) target = $region13
  $region12: #{encoder_residual_block.1} parent=0 // pred_region
    _
  $region13: #{encoder_residual_block.1} parent=0 // pred_fallthru
    _
  // Predicated region
  $region14: #{encoder_residual_block.1} parent=0 // pred_check
    _
  $region15: #{encoder_residual_block.1} parent=0 // pred_check_branch
    %21 = sbr.rel (0) target = $region17
  $region16: #{encoder_residual_block.1} parent=0 // pred_region
    _
  $region17: #{encoder_residual_block.1} parent=0 // pred_fallthru
    _
  // Predicated region
  $region18: #{encoder_residual_block.1} parent=0 // pred_check
    _
  $region19: #{encoder_residual_block.1} parent=0 // pred_check_branch
    %23 = sbr.rel (0) target = $region21
  $region20: #{encoder_residual_block.1} parent=0 // pred_region
    _
  $region21: #{encoder_residual_block.1} parent=0 // pred_fallthru
    _
  // Predicated region
  $region22: #{encoder_residual_block.1} parent=0 // pred_check
    _
  $region23: #{encoder_residual_block.1} parent=0 // pred_check_branch
    %25 = sbr.rel (0) target = $region25
  $region24: #{encoder_residual_block.1} parent=0 // pred_region
    _
  $region25: #{encoder_residual_block.1} parent=0 // pred_fallthru
    _
  // Predicated region
  $region26: #{encoder_residual_block.1} parent=0 // pred_check
    _
  $region27: #{encoder_residual_block.1} parent=0 // pred_check_branch
    %27 = sbr.rel (0) target = $region29
  $region28: #{encoder_residual_block.1} parent=0 // pred_region
    _
  $region29: #{encoder_residual_block.1} parent=0 // pred_fallthru
    _
  // Predicated region
  $region30: #{encoder_residual_block.1} parent=0 // pred_check
    _
  $region31: #{encoder_residual_block.1} parent=0 // pred_check_branch
    %29 = sbr.rel (0) target = $region33
  $region32: #{encoder_residual_block.1} parent=0 // pred_region
    _
  $region33: #{encoder_residual_block.1} parent=0 // pred_fallthru
    _
  // Predicated region
  $region34: #{encoder_residual_block.1} parent=0 // pred_check
    _
  $region35: #{encoder_residual_block.1} parent=0 // pred_check_branch
    %31 = sbr.rel (0) target = $region37
  $region36: #{encoder_residual_block.1} parent=0 // pred_region
    _
  $region37: #{encoder_residual_block.1} parent=0 // pred_fallthru
    _
  %v32 = vld [vmem:[%s0] sm:$0xff]
  %v33 = vld [vmem:[%s0 + $0x8] sm:$0xff]
  %v34 = vld [vmem:[%s0 + $0x10] sm:$0xff]
  %v35 = vld [vmem:[%s0 + $0x18] sm:$0xff]
  %40 = vrot.lane.b32.xlu0 %v32, 127
  %v41 = vpop.permute.xlu0 %40
  %42 = vrot.lane.b32.xlu0 %v33, 127
  %v43 = vpop.permute.xlu0 %42
  %44 = vrot.lane.b32.xlu0 %v34, 127
  %v45 = vpop.permute.xlu0 %44
  %46 = vrot.lane.b32.xlu0 %v35, 127
  %v47 = vpop.permute.xlu0 %46
  %52 = vrot.lane.b32.xlu0 %v32, 126
  %v53 = vpop.permute.xlu0 %52
  %54 = vrot.lane.b32.xlu0 %v33, 126
  %v55 = vpop.permute.xlu0 %54
  %56 = vrot.lane.b32.xlu0 %v34, 126
  %v57 = vpop.permute.xlu0 %56
  %58 = vrot.lane.b32.xlu0 %v35, 126
  %v59 = vpop.permute.xlu0 %58
  %64 = vrot.lane.b32.xlu0 %v32, 125
  %v65 = vpop.permute.xlu0 %64
  %66 = vrot.lane.b32.xlu0 %v33, 125
  %v67 = vpop.permute.xlu0 %66
  %68 = vrot.lane.b32.xlu0 %v34, 125
  %v69 = vpop.permute.xlu0 %68
  %70 = vrot.lane.b32.xlu0 %v35, 125
  %v71 = vpop.permute.xlu0 %70
  %76 = vrot.lane.b32.xlu0 %v32, 124
  %v77 = vpop.permute.xlu0 %76
  %78 = vrot.lane.b32.xlu0 %v33, 124
  %v79 = vpop.permute.xlu0 %78
  %80 = vrot.lane.b32.xlu0 %v34, 124
  %v81 = vpop.permute.xlu0 %80
  %82 = vrot.lane.b32.xlu0 %v35, 124
  %v83 = vpop.permute.xlu0 %82
  %v88 = vld [vmem:[%s1] sm:$0xff]
  %v89 = vld [vmem:[%s1 + $0x8] sm:$0xff]
  %v90 = vld [vmem:[%s1 + $0x10] sm:$0xff]
  %v91 = vld [vmem:[%s1 + $0x18] sm:$0xff]
  %v92 = vld [vmem:[%s1 + $0x20] sm:$0xff]
  %v93 = vld [vmem:[%s1 + $0x28] sm:$0xff]
  %v94 = vld [vmem:[%s1 + $0x30] sm:$0xff]
  %v95 = vld [vmem:[%s1 + $0x38] sm:$0xff]
  %v96 = vld [vmem:[%s3] sm:$0xff]
  %v97 = vld [vmem:[%s3 + $0x8] sm:$0xff]
  %v98 = vld [vmem:[%s3 + $0x10] sm:$0xff]
  %v99 = vld [vmem:[%s3 + $0x18] sm:$0xff]
  %101 = vset.pattern.permute.xlu0 0
  %102 = vperm.xlu0 %101, %v96
  %v103 = vpop.permute.xlu0 %102
  %106 = vset.pattern.permute.xlu0 0
  %107 = vperm.xlu0 %106, %v97
  %v108 = vpop.permute.xlu0 %107
  %111 = vset.pattern.permute.xlu0 0
  %112 = vperm.xlu0 %111, %v98
  %v113 = vpop.permute.xlu0 %112
  %116 = vset.pattern.permute.xlu0 0
  %117 = vperm.xlu0 %116, %v99
  %v118 = vpop.permute.xlu0 %117
  %vm120 = vcmask 261120
  %v122 = vsel %vm120, %v89, 0
  %v125 = vsel %vm120, %v91, 0
  %v128 = vsel %vm120, %v93, 0
  %v131 = vsel %vm120, %v95, 0
  %133 = vmatprep.subr.mxu0 0.0
  %134 = vmatpush1.msra.mxu0 %v32
  %135 = vmatprep.subr.mxu0 0.0
  %136 = vmatpush1.msra.mxu0 %v33
  %137 = vmatprep.subr.mxu0 0.0
  %138 = vmatpush1.msra.mxu0 %v34
  %139 = vmatprep.subr.mxu0 0.0
  %140 = vmatpush1.msra.mxu0 %v35
  %141 = vmatprep.subr.mxu0 0.0
  %142 = vmatpush1.msra.mxu0 %v41
  %143 = vmatprep.subr.mxu0 0.0
  %144 = vmatpush1.msra.mxu0 %v43
  %145 = vmatprep.subr.mxu0 0.0
  %146 = vmatpush1.msra.mxu0 %v45
  %147 = vmatprep.subr.mxu0 0.0
  %148 = vmatpush1.msra.mxu0 %v47
  %149 = vmatprep.subr.mxu0 0.0
  %150 = vmatpush1.msra.mxu0 %v53
  %151 = vmatprep.subr.mxu0 0.0
  %152 = vmatpush1.msra.mxu0 %v55
  %153 = vmatprep.subr.mxu0 0.0
  %154 = vmatpush1.msra.mxu0 %v57
  %155 = vmatprep.subr.mxu0 0.0
  %156 = vmatpush1.msra.mxu0 %v59
  %157 = vmatprep.subr.mxu0 0.0
  %158 = vmatpush1.msra.mxu0 %v65
  %159 = vmatprep.subr.mxu0 0.0
  %160 = vmatpush1.msra.mxu0 %v67
  %161 = vmatprep.subr.mxu0 0.0
  %162 = vmatpush1.msra.mxu0 %v69
  %163 = vmatprep.subr.mxu0 0.0
  %164 = vmatpush1.msra.mxu0 %v71
  %165 = vmatprep.subr.mxu0 0.0
  %166 = vmatpush1.msra.mxu0 %v77
  %167 = vmatprep.subr.mxu0 0.0
  %168 = vmatpush1.msra.mxu0 %v79
  %169 = vmatprep.subr.mxu0 0.0
  %170 = vmatpush1.msra.mxu0 %v81
  %171 = vmatprep.subr.mxu0 0.0
  %172 = vmatpush1.msra.mxu0 %v83
  %173 = vmatprep.subr.mxu0 0.0
  %174 = vmatpush1.msra.mxu0 0.0
  %175 = vmatprep.subr.mxu0 0.0
  %176 = vmatpush1.msra.mxu0 0.0
  %177 = vmatprep.subr.mxu0 0.0
  %178 = vmatpush1.msra.mxu0 0.0
  %179 = vmatprep.subr.mxu0 0.0
  %180 = vmatpush1.msra.mxu0 0.0
  %181 = vmatprep.subr.mxu0 0.0
  %182 = vmatpush1.msra.mxu0 0.0
  %183 = vmatprep.subr.mxu0 0.0
  %184 = vmatpush1.msra.mxu0 0.0
  %185 = vmatprep.subr.mxu0 0.0
  %186 = vmatpush1.msra.mxu0 0.0
  %187 = vmatprep.subr.mxu0 0.0
  %188 = vmatpush1.msra.mxu0 0.0
  %189 = vmatprep.subr.mxu0 0.0
  %190 = vmatpush1.msra.mxu0 0.0
  %191 = vmatprep.subr.mxu0 0.0
  %192 = vmatpush1.msra.mxu0 0.0
  %193 = vmatprep.subr.mxu0 0.0
  %194 = vmatpush1.msra.mxu0 0.0
  %195 = vmatprep.subr.mxu0 0.0
  %196 = vmatpush1.msra.mxu0 0.0
  %197 = vmatprep.mubr.f32.mxu0 %v122
  %198 = vmatmul.mubr.f32.gmra.mrb[0].mxu0 %v88
  %v199 = vpop.f32.mrb[0].mxu0
  %v200 = vadd.f32 %v103, %v199
  %v201 = vpop.f32.mrb[0].mxu0
  %202 = vmatprep.mubr.f32.mxu0 %v125
  %203 = vmatmul.mubr.f32.gmra.mrb[0].mxu0 %v90
  %v204 = vpop.f32.mrb[0].mxu0
  %v205 = vadd.f32 %v108, %v204
  %v206 = vpop.f32.mrb[0].mxu0
  %207 = vmatprep.mubr.f32.mxu0 %v128
  %208 = vmatmul.mubr.f32.gmra.mrb[0].mxu0 %v92
  %v209 = vpop.f32.mrb[0].mxu0
  %v210 = vadd.f32 %v113, %v209
  %v211 = vpop.f32.mrb[0].mxu0
  %212 = vmatprep.mubr.f32.mxu0 %v131
  %213 = vmatmul.mubr.f32.gmra.mrb[0].mxu0 %v94
  %v214 = vpop.f32.mrb[0].mxu0
  %v215 = vadd.f32 %v118, %v214
  %v216 = vpop.f32.mrb[0].mxu0
  %217 = vdwg.mxu0
  %v218 = vxor.u32 %v200, 2147483648
  %v219 = vxor.u32 %v205, 2147483648
  %v220 = vxor.u32 %v210, 2147483648
  %v221 = vxor.u32 %v215, 2147483648
  %v222 = vmul.f32 %v218, 1.442695
  %v223 = vpow.pop %v222
  %v224 = vmul.f32 %v219, 1.442695
  %v225 = vpow.pop %v224
  %v226 = vmul.f32 %v220, 1.442695
  %v227 = vpow.pop %v226
  %v228 = vmul.f32 %v221, 1.442695
  %v229 = vpow.pop %v228
  %v230 = vadd.f32 %v223, 1.0
  %v231 = vadd.f32 %v225, 1.0
  %v232 = vadd.f32 %v227, 1.0
  %v233 = vadd.f32 %v229, 1.0
  %v234 = vrcp.pop %v230
  %v235 = vmul.f32 1.0, %v234
  %v236 = vrcp.pop %v231
  %v237 = vmul.f32 1.0, %v236
  %v238 = vrcp.pop %v232
  %v239 = vmul.f32 1.0, %v238
  %v240 = vrcp.pop %v233
  %v241 = vmul.f32 1.0, %v240
  %v242 = vmul.f32 %v200, %v235
  %v243 = vmul.f32 %v205, %v237
  %v244 = vmul.f32 %v210, %v239
  %v245 = vmul.f32 %v215, %v241
  %v246 = vld [vmem:[%s6] sm:$0x1]
  %v248 = vlaneseq
  %v249 = vshrl.u32 %v248, 7
  %v250 = vsub.s32 0, %v249
  %v251 = vrot.slane %v246, %v250
  %v253 = vmul.f32 %v242, %v251
  %v254 = vmul.f32 %v243, %v251
  %v255 = vmul.f32 %v244, %v251
  %v256 = vmul.f32 %v245, %v251
  %261 = vrot.lane.b32.xlu0 %v253, 127
  %v262 = vpop.permute.xlu0 %261
  %263 = vrot.lane.b32.xlu0 %v254, 127
  %v264 = vpop.permute.xlu0 %263
  %265 = vrot.lane.b32.xlu0 %v255, 127
  %v266 = vpop.permute.xlu0 %265
  %267 = vrot.lane.b32.xlu0 %v256, 127
  %v268 = vpop.permute.xlu0 %267
  %273 = vrot.lane.b32.xlu0 %v253, 126
  %v274 = vpop.permute.xlu0 %273
  %275 = vrot.lane.b32.xlu0 %v254, 126
  %v276 = vpop.permute.xlu0 %275
  %277 = vrot.lane.b32.xlu0 %v255, 126
  %v278 = vpop.permute.xlu0 %277
  %279 = vrot.lane.b32.xlu0 %v256, 126
  %v280 = vpop.permute.xlu0 %279
  %v285 = vld [vmem:[%s2] sm:$0xff]
  %v286 = vld [vmem:[%s2 + $0x8] sm:$0xff]
  %v287 = vld [vmem:[%s2 + $0x10] sm:$0xff]
  %v288 = vld [vmem:[%s2 + $0x18] sm:$0xff]
  %289 = vset.pattern.permute.xlu0 1
  %290 = vperm.xlu0 %289, %v96
  %v291 = vpop.permute.xlu0 %290
  %293 = vset.pattern.permute.xlu0 1
  %294 = vperm.xlu0 %293, %v97
  %v295 = vpop.permute.xlu0 %294
  %297 = vset.pattern.permute.xlu0 1
  %298 = vperm.xlu0 %297, %v98
  %v299 = vpop.permute.xlu0 %298
  %301 = vset.pattern.permute.xlu0 1
  %302 = vperm.xlu0 %301, %v99
  %v303 = vpop.permute.xlu0 %302
  %vm305 = vcmask 785408
  %v307 = vsel %vm305, %v285, 0
  %v310 = vsel %vm305, %v286, 0
  %v313 = vsel %vm305, %v287, 0
  %v316 = vsel %vm305, %v288, 0
  %318 = vmatprep.subr.mxu0 0.0
  %319 = vmatpush1.msra.mxu0 %v253
  %320 = vmatprep.subr.mxu0 0.0
  %321 = vmatpush1.msra.mxu0 %v254
  %322 = vmatprep.subr.mxu0 0.0
  %323 = vmatpush1.msra.mxu0 %v255
  %324 = vmatprep.subr.mxu0 0.0
  %325 = vmatpush1.msra.mxu0 %v256
  %326 = vmatprep.subr.mxu0 0.0
  %327 = vmatpush1.msra.mxu0 %v262
  %328 = vmatprep.subr.mxu0 0.0
  %329 = vmatpush1.msra.mxu0 %v264
  %330 = vmatprep.subr.mxu0 0.0
  %331 = vmatpush1.msra.mxu0 %v266
  %332 = vmatprep.subr.mxu0 0.0
  %333 = vmatpush1.msra.mxu0 %v268
  %334 = vmatprep.subr.mxu0 0.0
  %335 = vmatpush1.msra.mxu0 %v274
  %336 = vmatprep.subr.mxu0 0.0
  %337 = vmatpush1.msra.mxu0 %v276
  %338 = vmatprep.subr.mxu0 0.0
  %339 = vmatpush1.msra.mxu0 %v278
  %340 = vmatprep.subr.mxu0 0.0
  %341 = vmatpush1.msra.mxu0 %v280
  %342 = vmatprep.subr.mxu0 0.0
  %343 = vmatpush1.msra.mxu0 0.0
  %344 = vmatprep.subr.mxu0 0.0
  %345 = vmatpush1.msra.mxu0 0.0
  %346 = vmatprep.subr.mxu0 0.0
  %347 = vmatpush1.msra.mxu0 0.0
  %348 = vmatprep.subr.mxu0 0.0
  %349 = vmatpush1.msra.mxu0 0.0
  %350 = vmatprep.subr.mxu0 0.0
  %351 = vmatpush1.msra.mxu0 0.0
  %352 = vmatprep.subr.mxu0 0.0
  %353 = vmatpush1.msra.mxu0 0.0
  %354 = vmatprep.subr.mxu0 0.0
  %355 = vmatpush1.msra.mxu0 0.0
  %356 = vmatprep.subr.mxu0 0.0
  %357 = vmatpush1.msra.mxu0 0.0
  %358 = vmatprep.subr.mxu0 0.0
  %359 = vmatpush1.msra.mxu0 0.0
  %360 = vmatprep.subr.mxu0 0.0
  %361 = vmatpush1.msra.mxu0 0.0
  %362 = vmatprep.subr.mxu0 0.0
  %363 = vmatpush1.msra.mxu0 0.0
  %364 = vmatprep.subr.mxu0 0.0
  %365 = vmatpush1.msra.mxu0 0.0
  %366 = vmatprep.subr.mxu0 0.0
  %367 = vmatpush1.msra.mxu0 0.0
  %368 = vmatprep.subr.mxu0 0.0
  %369 = vmatpush1.msra.mxu0 0.0
  %370 = vmatprep.subr.mxu0 0.0
  %371 = vmatpush1.msra.mxu0 0.0
  %372 = vmatprep.subr.mxu0 0.0
  %373 = vmatpush1.msra.mxu0 0.0
  %374 = vmatprep.subr.mxu0 0.0
  %375 = vmatpush1.msra.mxu0 0.0
  %376 = vmatprep.subr.mxu0 0.0
  %377 = vmatpush1.msra.mxu0 0.0
  %378 = vmatprep.subr.mxu0 0.0
  %379 = vmatpush1.msra.mxu0 0.0
  %380 = vmatprep.subr.mxu0 0.0
  %381 = vmatpush1.msra.mxu0 0.0
  %382 = vmatprep.mubr.f32.mxu0 0.0
  %383 = vmatmul.mubr.f32.gmra.mrb[0].mxu0 %v307
  %v384 = vpop.f32.mrb[0].mxu0
  %v385 = vadd.f32 %v291, %v384
  %v386 = vpop.f32.mrb[0].mxu0
  %387 = vmatprep.mubr.f32.mxu0 0.0
  %388 = vmatmul.mubr.f32.gmra.mrb[0].mxu0 %v310
  %v389 = vpop.f32.mrb[0].mxu0
  %v390 = vadd.f32 %v295, %v389
  %v391 = vpop.f32.mrb[0].mxu0
  %392 = vmatprep.mubr.f32.mxu0 0.0
  %393 = vmatmul.mubr.f32.gmra.mrb[0].mxu0 %v313
  %v394 = vpop.f32.mrb[0].mxu0
  %v395 = vadd.f32 %v299, %v394
  %v396 = vpop.f32.mrb[0].mxu0
  %397 = vmatprep.mubr.f32.mxu0 0.0
  %398 = vmatmul.mubr.f32.gmra.mrb[0].mxu0 %v316
  %v399 = vpop.f32.mrb[0].mxu0
  %v400 = vadd.f32 %v303, %v399
  %v401 = vpop.f32.mrb[0].mxu0
  %402 = vdwg.mxu0
  %v403 = vld [vmem:[%s7] sm:$0xff]
  %v404 = vld [vmem:[%s7 + $0x8] sm:$0xff]
  %v405 = vld [vmem:[%s7 + $0x10] sm:$0xff]
  %v406 = vld [vmem:[%s7 + $0x18] sm:$0xff]
  %v407 = vld [vmem:[%s7 + $0x20] sm:$0xff]
  %v408 = vld [vmem:[%s7 + $0x28] sm:$0xf]
  %vm409 = vcmask 359424
  %v411 = vsel %vm409, %v385, 0
  %v414 = vsel %vm409, %v390, 0
  %v417 = vsel %vm409, %v395, 0
  %v420 = vsel %vm409, %v400, 0
  %vm422 = vcmask 1043456
  %v424 = vsel %vm422, %v408, 0
  %426 = vmatprep.subr.mxu0 0.0
  %427 = vmatpush1.msra.mxu0 %v403
  %428 = vmatprep.subr.mxu0 0.0
  %429 = vmatpush1.msra.mxu0 %v404
  %430 = vmatprep.subr.mxu0 0.0
  %431 = vmatpush1.msra.mxu0 %v405
  %432 = vmatprep.subr.mxu0 0.0
  %433 = vmatpush1.msra.mxu0 %v406
  %434 = vmatprep.subr.mxu0 0.0
  %435 = vmatpush1.msra.mxu0 %v407
  %436 = vmatprep.subr.mxu0 0.0
  %437 = vmatpush1.msra.mxu0 %v424
  %438 = vmatprep.subr.mxu0 0.0
  %439 = vmatpush1.msra.mxu0 0.0
  %440 = vmatprep.subr.mxu0 0.0
  %441 = vmatpush1.msra.mxu0 0.0
  %442 = vmatprep.subr.mxu0 0.0
  %443 = vmatpush1.msra.mxu0 0.0
  %444 = vmatprep.subr.mxu0 0.0
  %445 = vmatpush1.msra.mxu0 0.0
  %446 = vmatprep.subr.mxu0 0.0
  %447 = vmatpush1.msra.mxu0 0.0
  %448 = vmatprep.subr.mxu0 0.0
  %449 = vmatpush1.msra.mxu0 0.0
  %450 = vmatprep.subr.mxu0 0.0
  %451 = vmatpush1.msra.mxu0 0.0
  %452 = vmatprep.subr.mxu0 0.0
  %453 = vmatpush1.msra.mxu0 0.0
  %454 = vmatprep.subr.mxu0 0.0
  %455 = vmatpush1.msra.mxu0 0.0
  %456 = vmatprep.subr.mxu0 0.0
  %457 = vmatpush1.msra.mxu0 0.0
  %458 = vmatprep.subr.mxu0 0.0
  %459 = vmatpush1.msra.mxu0 0.0
  %460 = vmatprep.subr.mxu0 0.0
  %461 = vmatpush1.msra.mxu0 0.0
  %462 = vmatprep.subr.mxu0 0.0
  %463 = vmatpush1.msra.mxu0 0.0
  %464 = vmatprep.subr.mxu0 0.0
  %465 = vmatpush1.msra.mxu0 0.0
  %466 = vmatprep.subr.mxu0 0.0
  %467 = vmatpush1.msra.mxu0 0.0
  %468 = vmatprep.subr.mxu0 0.0
  %469 = vmatpush1.msra.mxu0 0.0
  %470 = vmatprep.subr.mxu0 0.0
  %471 = vmatpush1.msra.mxu0 0.0
  %472 = vmatprep.subr.mxu0 0.0
  %473 = vmatpush1.msra.mxu0 0.0
  %474 = vmatprep.subr.mxu0 0.0
  %475 = vmatpush1.msra.mxu0 0.0
  %476 = vmatprep.subr.mxu0 0.0
  %477 = vmatpush1.msra.mxu0 0.0
  %478 = vmatprep.subr.mxu0 0.0
  %479 = vmatpush1.msra.mxu0 0.0
  %480 = vmatprep.subr.mxu0 0.0
  %481 = vmatpush1.msra.mxu0 0.0
  %482 = vmatprep.subr.mxu0 0.0
  %483 = vmatpush1.msra.mxu0 0.0
  %484 = vmatprep.subr.mxu0 0.0
  %485 = vmatpush1.msra.mxu0 0.0
  %486 = vmatprep.subr.mxu0 0.0
  %487 = vmatpush1.msra.mxu0 0.0
  %488 = vmatprep.subr.mxu0 0.0
  %489 = vmatpush1.msra.mxu0 0.0
  %490 = vmatprep.mubr.f32.mxu0 0.0
  %491 = vmatmul.mubr.f32.gmra.mrb[0].mxu0 %v411
  %v492 = vpop.f32.mrb[0].mxu0
  %v493 = vadd.f32 0.0, %v492
  %v494 = vpop.f32.mrb[0].mxu0
  %495 = vmatprep.mubr.f32.mxu0 0.0
  %496 = vmatmul.mubr.f32.gmra.mrb[0].mxu0 %v414
  %v497 = vpop.f32.mrb[0].mxu0
  %v498 = vadd.f32 0.0, %v497
  %v499 = vpop.f32.mrb[0].mxu0
  %500 = vmatprep.mubr.f32.mxu0 0.0
  %501 = vmatmul.mubr.f32.gmra.mrb[0].mxu0 %v417
  %v502 = vpop.f32.mrb[0].mxu0
  %v503 = vadd.f32 0.0, %v502
  %v504 = vpop.f32.mrb[0].mxu0
  %505 = vmatprep.mubr.f32.mxu0 0.0
  %506 = vmatmul.mubr.f32.gmra.mrb[0].mxu0 %v420
  %v507 = vpop.f32.mrb[0].mxu0
  %v508 = vadd.f32 0.0, %v507
  %v509 = vpop.f32.mrb[0].mxu0
  %510 = vdwg.mxu0
  %v511 = vld [vmem:[%s4] sm:$0x3]
  %v513 = vsel %vm120, %v511, 0
  %515 = vmatprep.subr.mxu0 0.0
  %516 = vmatpush1.msra.mxu0 %v493
  %517 = vmatprep.subr.mxu0 0.0
  %518 = vmatpush1.msra.mxu0 %v498
  %519 = vmatprep.subr.mxu0 0.0
  %520 = vmatpush1.msra.mxu0 %v503
  %521 = vmatprep.subr.mxu0 0.0
  %522 = vmatpush1.msra.mxu0 %v508
  %523 = vmatprep.subr.mxu0 0.0
  %524 = vmatpush1.msra.mxu0 0.0
  %525 = vmatprep.subr.mxu0 0.0
  %526 = vmatpush1.msra.mxu0 0.0
  %527 = vmatprep.subr.mxu0 0.0
  %528 = vmatpush1.msra.mxu0 0.0
  %529 = vmatprep.subr.mxu0 0.0
  %530 = vmatpush1.msra.mxu0 0.0
  %531 = vmatprep.subr.mxu0 0.0
  %532 = vmatpush1.msra.mxu0 0.0
  %533 = vmatprep.subr.mxu0 0.0
  %534 = vmatpush1.msra.mxu0 0.0
  %535 = vmatprep.subr.mxu0 0.0
  %536 = vmatpush1.msra.mxu0 0.0
  %537 = vmatprep.subr.mxu0 0.0
  %538 = vmatpush1.msra.mxu0 0.0
  %539 = vmatprep.subr.mxu0 0.0
  %540 = vmatpush1.msra.mxu0 0.0
  %541 = vmatprep.subr.mxu0 0.0
  %542 = vmatpush1.msra.mxu0 0.0
  %543 = vmatprep.subr.mxu0 0.0
  %544 = vmatpush1.msra.mxu0 0.0
  %545 = vmatprep.subr.mxu0 0.0
  %546 = vmatpush1.msra.mxu0 0.0
  %547 = vmatprep.subr.mxu0 0.0
  %548 = vmatpush1.msra.mxu0 0.0
  %549 = vmatprep.subr.mxu0 0.0
  %550 = vmatpush1.msra.mxu0 0.0
  %551 = vmatprep.subr.mxu0 0.0
  %552 = vmatpush1.msra.mxu0 0.0
  %553 = vmatprep.subr.mxu0 0.0
  %554 = vmatpush1.msra.mxu0 0.0
  %555 = vmatprep.subr.mxu0 0.0
  %556 = vmatpush1.msra.mxu0 0.0
  %557 = vmatprep.subr.mxu0 0.0
  %558 = vmatpush1.msra.mxu0 0.0
  %559 = vmatprep.subr.mxu0 0.0
  %560 = vmatpush1.msra.mxu0 0.0
  %561 = vmatprep.subr.mxu0 0.0
  %562 = vmatpush1.msra.mxu0 0.0
  %563 = vmatprep.subr.mxu0 0.0
  %564 = vmatpush1.msra.mxu0 0.0
  %565 = vmatprep.subr.mxu0 0.0
  %566 = vmatpush1.msra.mxu0 0.0
  %567 = vmatprep.subr.mxu0 0.0
  %568 = vmatpush1.msra.mxu0 0.0
  %569 = vmatprep.subr.mxu0 0.0
  %570 = vmatpush1.msra.mxu0 0.0
  %571 = vmatprep.subr.mxu0 0.0
  %572 = vmatpush1.msra.mxu0 0.0
  %573 = vmatprep.subr.mxu0 0.0
  %574 = vmatpush1.msra.mxu0 0.0
  %575 = vmatprep.subr.mxu0 0.0
  %576 = vmatpush1.msra.mxu0 0.0
  %577 = vmatprep.subr.mxu0 0.0
  %578 = vmatpush1.msra.mxu0 0.0
  %579 = vmatprep.mubr.f32.mxu0 0.0
  %580 = vmatmul.mubr.f32.gmra.mrb[0].mxu0 %v513
  %v581 = vpop.f32.mrb[0].mxu0
  %v582 = vadd.f32 0.0, %v581
  %v583 = vpop.f32.mrb[0].mxu0
  %584 = vdwg.mxu0
  %v585 = vmax.f32 %v582, 0.0
  %v586 = vld [vmem:[%s5] sm:$0xff]
  %v587 = vld [vmem:[%s5 + $0x8] sm:$0xff]
  %v588 = vld [vmem:[%s5 + $0x10] sm:$0xff]
  %v589 = vld [vmem:[%s5 + $0x18] sm:$0xff]
  %vm590 = vcmask 15360
  %v592 = vsel %vm590, %v586, 0
  %v595 = vsel %vm590, %v587, 0
  %v598 = vsel %vm590, %v588, 0
  %v601 = vsel %vm590, %v589, 0
  %vm603 = vcmask 1041408
  %v605 = vsel %vm603, %v585, 0
  %607 = vmatprep.subr.mxu0 0.0
  %608 = vmatpush1.msra.mxu0 %v605
  %609 = vmatprep.subr.mxu0 0.0
  %610 = vmatpush1.msra.mxu0 0.0
  %611 = vmatprep.subr.mxu0 0.0
  %612 = vmatpush1.msra.mxu0 0.0
  %613 = vmatprep.subr.mxu0 0.0
  %614 = vmatpush1.msra.mxu0 0.0
  %615 = vmatprep.subr.mxu0 0.0
  %616 = vmatpush1.msra.mxu0 0.0
  %617 = vmatprep.subr.mxu0 0.0
  %618 = vmatpush1.msra.mxu0 0.0
  %619 = vmatprep.subr.mxu0 0.0
  %620 = vmatpush1.msra.mxu0 0.0
  %621 = vmatprep.subr.mxu0 0.0
  %622 = vmatpush1.msra.mxu0 0.0
  %623 = vmatprep.subr.mxu0 0.0
  %624 = vmatpush1.msra.mxu0 0.0
  %625 = vmatprep.subr.mxu0 0.0
  %626 = vmatpush1.msra.mxu0 0.0
  %627 = vmatprep.subr.mxu0 0.0
  %628 = vmatpush1.msra.mxu0 0.0
  %629 = vmatprep.subr.mxu0 0.0
  %630 = vmatpush1.msra.mxu0 0.0
  %631 = vmatprep.subr.mxu0 0.0
  %632 = vmatpush1.msra.mxu0 0.0
  %633 = vmatprep.subr.mxu0 0.0
  %634 = vmatpush1.msra.mxu0 0.0
  %635 = vmatprep.subr.mxu0 0.0
  %636 = vmatpush1.msra.mxu0 0.0
  %637 = vmatprep.subr.mxu0 0.0
  %638 = vmatpush1.msra.mxu0 0.0
  %639 = vmatprep.subr.mxu0 0.0
  %640 = vmatpush1.msra.mxu0 0.0
  %641 = vmatprep.subr.mxu0 0.0
  %642 = vmatpush1.msra.mxu0 0.0
  %643 = vmatprep.subr.mxu0 0.0
  %644 = vmatpush1.msra.mxu0 0.0
  %645 = vmatprep.subr.mxu0 0.0
  %646 = vmatpush1.msra.mxu0 0.0
  %647 = vmatprep.subr.mxu0 0.0
  %648 = vmatpush1.msra.mxu0 0.0
  %649 = vmatprep.subr.mxu0 0.0
  %650 = vmatpush1.msra.mxu0 0.0
  %651 = vmatprep.subr.mxu0 0.0
  %652 = vmatpush1.msra.mxu0 0.0
  %653 = vmatprep.subr.mxu0 0.0
  %654 = vmatpush1.msra.mxu0 0.0
  %655 = vmatprep.subr.mxu0 0.0
  %656 = vmatpush1.msra.mxu0 0.0
  %657 = vmatprep.subr.mxu0 0.0
  %658 = vmatpush1.msra.mxu0 0.0
  %659 = vmatprep.subr.mxu0 0.0
  %660 = vmatpush1.msra.mxu0 0.0
  %661 = vmatprep.subr.mxu0 0.0
  %662 = vmatpush1.msra.mxu0 0.0
  %663 = vmatprep.subr.mxu0 0.0
  %664 = vmatpush1.msra.mxu0 0.0
  %665 = vmatprep.subr.mxu0 0.0
  %666 = vmatpush1.msra.mxu0 0.0
  %667 = vmatprep.subr.mxu0 0.0
  %668 = vmatpush1.msra.mxu0 0.0
  %669 = vmatprep.subr.mxu0 0.0
  %670 = vmatpush1.msra.mxu0 0.0
  %671 = vmatprep.mubr.f32.mxu0 0.0
  %672 = vmatmul.mubr.f32.gmra.mrb[0].mxu0 %v592
  %v673 = vpop.f32.mrb[0].mxu0
  %v674 = vadd.f32 0.0, %v673
  %v675 = vpop.f32.mrb[0].mxu0
  %676 = vmatprep.mubr.f32.mxu0 0.0
  %677 = vmatmul.mubr.f32.gmra.mrb[0].mxu0 %v595
  %v678 = vpop.f32.mrb[0].mxu0
  %v679 = vadd.f32 0.0, %v678
  %v680 = vpop.f32.mrb[0].mxu0
  %681 = vmatprep.mubr.f32.mxu0 0.0
  %682 = vmatmul.mubr.f32.gmra.mrb[0].mxu0 %v598
  %v683 = vpop.f32.mrb[0].mxu0
  %v684 = vadd.f32 0.0, %v683
  %v685 = vpop.f32.mrb[0].mxu0
  %686 = vmatprep.mubr.f32.mxu0 0.0
  %687 = vmatmul.mubr.f32.gmra.mrb[0].mxu0 %v601
  %v688 = vpop.f32.mrb[0].mxu0
  %v689 = vadd.f32 0.0, %v688
  %v690 = vpop.f32.mrb[0].mxu0
  %691 = vdwg.mxu0
  %v692 = vxor.u32 %v674, 2147483648
  %v693 = vxor.u32 %v679, 2147483648
  %v694 = vxor.u32 %v684, 2147483648
  %v695 = vxor.u32 %v689, 2147483648
  %v696 = vmul.f32 %v692, 1.442695
  %v697 = vpow.pop %v696
  %v698 = vmul.f32 %v693, 1.442695
  %v699 = vpow.pop %v698
  %v700 = vmul.f32 %v694, 1.442695
  %v701 = vpow.pop %v700
  %v702 = vmul.f32 %v695, 1.442695
  %v703 = vpow.pop %v702
  %v704 = vadd.f32 %v697, 1.0
  %v705 = vadd.f32 %v699, 1.0
  %v706 = vadd.f32 %v701, 1.0
  %v707 = vadd.f32 %v703, 1.0
  %v708 = vrcp.pop %v704
  %v709 = vmul.f32 1.0, %v708
  %v710 = vrcp.pop %v705
  %v711 = vmul.f32 1.0, %v710
  %v712 = vrcp.pop %v706
  %v713 = vmul.f32 1.0, %v712
  %v714 = vrcp.pop %v707
  %v715 = vmul.f32 1.0, %v714
  %v716 = vld [vmem:[%s8] sm:$0x3]
  %v718 = vsel %vm590, %v709, 0
  %v721 = vsel %vm590, %v711, 0
  %v724 = vsel %vm590, %v713, 0
  %v727 = vsel %vm590, %v715, 0
  %v730 = vsel %vm603, %v716, 0
  %732 = vmatprep.subr.mxu0 0.0
  %733 = vmatpush1.msra.mxu0 %v730
  %734 = vmatprep.subr.mxu0 0.0
  %735 = vmatpush1.msra.mxu0 0.0
  %736 = vmatprep.subr.mxu0 0.0
  %737 = vmatpush1.msra.mxu0 0.0
  %738 = vmatprep.subr.mxu0 0.0
  %739 = vmatpush1.msra.mxu0 0.0
  %740 = vmatprep.subr.mxu0 0.0
  %741 = vmatpush1.msra.mxu0 0.0
  %742 = vmatprep.subr.mxu0 0.0
  %743 = vmatpush1.msra.mxu0 0.0
  %744 = vmatprep.subr.mxu0 0.0
  %745 = vmatpush1.msra.mxu0 0.0
  %746 = vmatprep.subr.mxu0 0.0
  %747 = vmatpush1.msra.mxu0 0.0
  %748 = vmatprep.subr.mxu0 0.0
  %749 = vmatpush1.msra.mxu0 0.0
  %750 = vmatprep.subr.mxu0 0.0
  %751 = vmatpush1.msra.mxu0 0.0
  %752 = vmatprep.subr.mxu0 0.0
  %753 = vmatpush1.msra.mxu0 0.0
  %754 = vmatprep.subr.mxu0 0.0
  %755 = vmatpush1.msra.mxu0 0.0
  %756 = vmatprep.subr.mxu0 0.0
  %757 = vmatpush1.msra.mxu0 0.0
  %758 = vmatprep.subr.mxu0 0.0
  %759 = vmatpush1.msra.mxu0 0.0
  %760 = vmatprep.subr.mxu0 0.0
  %761 = vmatpush1.msra.mxu0 0.0
  %762 = vmatprep.subr.mxu0 0.0
  %763 = vmatpush1.msra.mxu0 0.0
  %764 = vmatprep.subr.mxu0 0.0
  %765 = vmatpush1.msra.mxu0 0.0
  %766 = vmatprep.subr.mxu0 0.0
  %767 = vmatpush1.msra.mxu0 0.0
  %768 = vmatprep.subr.mxu0 0.0
  %769 = vmatpush1.msra.mxu0 0.0
  %770 = vmatprep.subr.mxu0 0.0
  %771 = vmatpush1.msra.mxu0 0.0
  %772 = vmatprep.subr.mxu0 0.0
  %773 = vmatpush1.msra.mxu0 0.0
  %774 = vmatprep.subr.mxu0 0.0
  %775 = vmatpush1.msra.mxu0 0.0
  %776 = vmatprep.subr.mxu0 0.0
  %777 = vmatpush1.msra.mxu0 0.0
  %778 = vmatprep.subr.mxu0 0.0
  %779 = vmatpush1.msra.mxu0 0.0
  %780 = vmatprep.subr.mxu0 0.0
  %781 = vmatpush1.msra.mxu0 0.0
  %782 = vmatprep.subr.mxu0 0.0
  %783 = vmatpush1.msra.mxu0 0.0
  %784 = vmatprep.subr.mxu0 0.0
  %785 = vmatpush1.msra.mxu0 0.0
  %786 = vmatprep.subr.mxu0 0.0
  %787 = vmatpush1.msra.mxu0 0.0
  %788 = vmatprep.subr.mxu0 0.0
  %789 = vmatpush1.msra.mxu0 0.0
  %790 = vmatprep.subr.mxu0 0.0
  %791 = vmatpush1.msra.mxu0 0.0
  %792 = vmatprep.subr.mxu0 0.0
  %793 = vmatpush1.msra.mxu0 0.0
  %794 = vmatprep.subr.mxu0 0.0
  %795 = vmatpush1.msra.mxu0 0.0
  %796 = vmatprep.mubr.f32.mxu0 0.0
  %797 = vmatmul.mubr.f32.gmra.mrb[0].mxu0 %v718
  %v798 = vpop.f32.mrb[0].mxu0
  %v799 = vadd.f32 0.0, %v798
  %v800 = vpop.f32.mrb[0].mxu0
  %801 = vmatprep.mubr.f32.mxu0 0.0
  %802 = vmatmul.mubr.f32.gmra.mrb[0].mxu0 %v721
  %v803 = vpop.f32.mrb[0].mxu0
  %v804 = vadd.f32 0.0, %v803
  %v805 = vpop.f32.mrb[0].mxu0
  %806 = vmatprep.mubr.f32.mxu0 0.0
  %807 = vmatmul.mubr.f32.gmra.mrb[0].mxu0 %v724
  %v808 = vpop.f32.mrb[0].mxu0
  %v809 = vadd.f32 0.0, %v808
  %v810 = vpop.f32.mrb[0].mxu0
  %811 = vmatprep.mubr.f32.mxu0 0.0
  %812 = vmatmul.mubr.f32.gmra.mrb[0].mxu0 %v727
  %v813 = vpop.f32.mrb[0].mxu0
  %v814 = vadd.f32 0.0, %v813
  %v815 = vpop.f32.mrb[0].mxu0
  %816 = vdwg.mxu0
  %v817 = vmul.f32 %v385, %v799
  %v818 = vmul.f32 %v390, %v804
  %v819 = vmul.f32 %v395, %v809
  %v820 = vmul.f32 %v400, %v814
  %v821 = vmul.f32 %v817, 0.1
  %v822 = vmul.f32 %v818, 0.1
  %v823 = vmul.f32 %v819, 0.1
  %v824 = vmul.f32 %v820, 0.1
  %829 = vrot.lane.b32.xlu0 %v821, 3
  %v830 = vpop.permute.xlu0 %829
  %831 = vrot.lane.b32.xlu0 %v822, 3
  %v832 = vpop.permute.xlu0 %831
  %833 = vrot.lane.b32.xlu0 %v823, 3
  %v834 = vpop.permute.xlu0 %833
  %835 = vrot.lane.b32.xlu0 %v824, 3
  %v836 = vpop.permute.xlu0 %835
  %v841 = vadd.f32 %v32, %v830
  %v842 = vadd.f32 %v33, %v832
  %v843 = vadd.f32 %v34, %v834
  %v844 = vadd.f32 %v35, %v836
  %849 = vrot.lane.b32.xlu0 %v841, 125
  %v850 = vpop.permute.xlu0 %849
  %851 = vrot.lane.b32.xlu0 %v842, 125
  %v852 = vpop.permute.xlu0 %851
  %853 = vrot.lane.b32.xlu0 %v843, 125
  %v854 = vpop.permute.xlu0 %853
  %855 = vrot.lane.b32.xlu0 %v844, 125
  %v856 = vpop.permute.xlu0 %855
  %861 = vst.msk [vmem:[%s9] sm:$0xff] %vm409, %v850
  %862 = vst.msk [vmem:[%s9 + $0x8] sm:$0xff] %vm409, %v852
  %863 = vst.msk [vmem:[%s9 + $0x10] sm:$0xff] %vm409, %v854
  %864 = vst.msk [vmem:[%s9 + $0x18] sm:$0xff] %vm409, %v856
  // Predicated region
  $region38: #{encoder_residual_block.1} parent=0 // pred_check
    _
  $region39: #{encoder_residual_block.1} parent=0 // pred_check_branch
    %866 = sbr.rel (0) target = $region41
  $region40: #{encoder_residual_block.1} parent=0 // pred_region
    _
  $region41: #{encoder_residual_block.1} parent=0 // pred_fallthru
    _
  // Predicated region
  $region42: #{encoder_residual_block.1} parent=0 // pred_check
    _
  $region43: #{encoder_residual_block.1} parent=0 // pred_check_branch
    %868 = sbr.rel (0) target = $region45
  $region44: #{encoder_residual_block.1} parent=0 // pred_region
    _
  $region45: #{encoder_residual_block.1} parent=0 // pred_fallthru
    _

</llo_original>
